<compile_context>
chip_gen: v5e
topology: v5e:2x2
jax: 0.10.0
libtpu: 0.0.40
codegen_flags: <defaults>
</compile_context>

<pallas_src>
import jax
import jax.numpy as jnp
import numpy as np
from jax.experimental import pallas as pl
from jax.experimental.pallas import tpu as pltpu

_LANE = 128
_SUBLANE = 8  # f32 sublane count


def _round_up(n, m):
    return ((n + m - 1) // m) * m


def _pad2d(w, rows, cols):
    r, c = w.shape
    return jnp.pad(w, ((0, rows - r), (0, cols - c)))


def _rnn_auto_fused_kernel(x_ref, ewi_ref, ewh_ref, eb_ref, wcombo_ref, db_ref,
                           dwh_hbm, dwo_hbm,
                           hid_ref, lat_ref, rec_ref,
                           dwh_vmem, dwo_vmem, dma_sems, dec_h_scr):
    """Fused encoder+decoder RNN autoencoder. Single launch; loops unrolled."""
    f32 = jnp.float32
    Bp = lat_ref.shape[0]                      # padded batch (multiple of 8)
    T = x_ref.shape[0] // Bp
    T_dec = rec_ref.shape[0] // Bp
    Hp = ewh_ref.shape[0]
    Lp = wcombo_ref.shape[1] - Hp

    # Prefetch decoder weights (Wh_d, Wo_d) from HBM under the encoder loop.
    dwh_cp = pltpu.make_async_copy(dwh_hbm, dwh_vmem, dma_sems.at[0])
    dwo_cp = pltpu.make_async_copy(dwo_hbm, dwo_vmem, dma_sems.at[1])
    dwh_cp.start()
    dwo_cp.start()

    # Invariant loads hoisted out of the (fully unrolled, small-T) recurrences.
    wh_e = ewh_ref[...]

    # ---- Encoder -----------------------------------------------------------
    # Batched input projection for ALL T steps in one MXU matmul, with the h2h
    # bias folded in, so the serial loop below is just h @ Wh + const.
    zi_all = jnp.dot(x_ref[...], ewi_ref[...],
                     preferred_element_type=f32) + eb_ref[...]        # (T*Bp, Hp)

    h = jnp.zeros((Bp, Hp), f32)
    for t in range(T):                         # T is small/static -> unroll ok
        z = jnp.dot(h, wh_e, preferred_element_type=f32) + zi_all[t * Bp:(t + 1) * Bp]
        h = jnp.maximum(z, 0.0)
        hid_ref[pl.ds(t * Bp, Bp), :] = h.astype(hid_ref.dtype)       # (8,128) store

    # One packed matmul on the last encoder state gives latent AND zi_dec:
    #   [Wo_e | Wo_e @ Wi_d]  (Hp, Lp+Hp), computed on host.
    combo = jnp.dot(h, wcombo_ref[...], preferred_element_type=f32)   # (Bp, Lp+Hp)
    latent = combo[:, :Lp]
    lat_ref[...] = latent.astype(lat_ref.dtype)
    zi_dec = combo[:, Lp:] + db_ref[...]                              # (Bp, Hp)

    # ---- Decoder -----------------------------------------------------------
    dwh_cp.wait()                              # Wh_d must be resident now
    wh_d = dwh_vmem[...]

    hd = jnp.zeros((Bp, Hp), f32)
    for t in range(T_dec):
        hd = jnp.maximum(jnp.dot(hd, wh_d, preferred_element_type=f32) + zi_dec, 0.0)
        dec_h_scr[pl.ds(t * Bp, Bp), :] = hd                          # (8,128) store

    # One batched h2o projection over all decoder steps (lane-dense store).
    dwo_cp.wait()
    rec = jnp.dot(dec_h_scr[...], dwo_vmem[...], preferred_element_type=f32)
    rec_ref[...] = rec.astype(rec_ref.dtype)


def rnn_autoencoder_forward(x, params, sequence_length):
    """Full RNNMulti forward for task='RNNAuto' (mask=None, delay=0).

    x : (T, B, d_input) float32
    returns (hidden (T,B,d_hidden), latent (B,d_latent), reconstructed (T_dec,B,d_input)).
    """
    enc, dec = params["encoder"], params["decoder"]
    T, B, Din = x.shape
    H = enc["w_h2h"].shape[0]
    Dlat = enc["w_h2o"].shape[1]
    T_dec = sequence_length

    # Pad feature dims to lane width (128) and batch to sublane width (8).
    # Zero-padding is exact: zero feature contributions + relu keep real rows
    # unaffected (batch rows are independent); wrapper slices padding off.
    Dp = _round_up(Din, _LANE)
    Hp = _round_up(H, _LANE)
    Lp = _round_up(Dlat, _LANE)
    Bp = _round_up(B, _SUBLANE)

    x2 = jnp.pad(x.astype(jnp.float32),
                 ((0, 0), (0, Bp - B), (0, Dp - Din))).reshape(T * Bp, Dp)

    e_wi = _pad2d(enc["w_i2h"], Dp, Hp)
    e_wh = _pad2d(enc["w_h2h"], Hp, Hp)
    e_b = jnp.pad(enc["b_h2h"], (0, Hp - H)).reshape(1, Hp)
    d_b = jnp.pad(dec["b_h2h"], (0, Hp - H)).reshape(1, Hp)
    d_wh = _pad2d(dec["w_h2h"], Hp, Hp)
    d_wo = _pad2d(dec["w_h2o"], Hp, Dp)

    # Host-fused handoff weight: zi_dec = h_T @ (Wo_e @ Wi_d) + b_d.
    w_fused = jnp.dot(enc["w_h2o"], dec["w_i2h"],
                      precision=jax.lax.Precision.HIGHEST)            # (H, H)
    wo_combo = jnp.concatenate(
        [_pad2d(enc["w_h2o"], Hp, Lp), _pad2d(w_fused, Hp, Hp)], axis=1)  # (Hp, Lp+Hp)

    hid2, lat, rec2 = pl.pallas_call(
        _rnn_auto_fused_kernel,
        out_shape=(
            jax.ShapeDtypeStruct((T * Bp, Hp), jnp.float32),
            jax.ShapeDtypeStruct((Bp, Lp), jnp.float32),
            jax.ShapeDtypeStruct((T_dec * Bp, Dp), jnp.float32),
        ),
        grid=(1,),
        in_specs=[
            pl.BlockSpec((T * Bp, Dp), lambda i: (0, 0)),
            pl.BlockSpec((Dp, Hp), lambda i: (0, 0)),
            pl.BlockSpec((Hp, Hp), lambda i: (0, 0)),
            pl.BlockSpec((1, Hp), lambda i: (0, 0)),
            pl.BlockSpec((Hp, Lp + Hp), lambda i: (0, 0)),
            pl.BlockSpec((1, Hp), lambda i: (0, 0)),
            pl.BlockSpec(memory_space=pl.ANY),      # Wh_d: manual DMA (prefetch)
            pl.BlockSpec(memory_space=pl.ANY),      # Wo_d: manual DMA (prefetch)
        ],
        out_specs=[
            pl.BlockSpec((T * Bp, Hp), lambda i: (0, 0)),
            pl.BlockSpec((Bp, Lp), lambda i: (0, 0)),
            pl.BlockSpec((T_dec * Bp, Dp), lambda i: (0, 0)),
        ],
        scratch_shapes=[
            pltpu.VMEM((Hp, Hp), jnp.float32),      # Wh_d landing buffer
            pltpu.VMEM((Hp, Dp), jnp.float32),      # Wo_d landing buffer
            pltpu.SemaphoreType.DMA((2,)),
            pltpu.VMEM((T_dec * Bp, Hp), jnp.float32),  # decoder hidden trajectory
        ],
    )(x2, e_wi, e_wh, e_b, wo_combo, d_b, d_wh, d_wo)

    hidden = hid2.reshape(T, Bp, Hp)[:, :B, :H]
    latent = lat[:B, :Dlat]
    reconstructed = rec2.reshape(T_dec, Bp, Dp)[:, :B, :Din]
    return hidden, latent, reconstructed


def _linear_init(key, fan_in, fan_out, with_bias):
    """Deterministic stand-in for torch.nn.Linear default init (uniform ±1/sqrt(fan_in)).
    Weight returned transposed: shape (fan_in, fan_out)."""
    kw, kb = jax.random.split(key)
    bound = 1.0 / np.sqrt(fan_in)
    w = jax.random.uniform(kw, (fan_in, fan_out), jnp.float32, -bound, bound)
    b = (jax.random.uniform(kb, (fan_out,), jnp.float32, -bound, bound)
         if with_bias else jnp.zeros((fan_out,), jnp.float32))
    return w, b


def make_params(key, d_input, d_hidden, d_latent):
    keys = jax.random.split(key, 6)
    # Encoder RNN: i2h (bias=0), h2h (bias=True), h2o (bias=0)
    enc_wi, _ = _linear_init(keys[0], d_input, d_hidden, with_bias=False)
    enc_wh, enc_bh = _linear_init(keys[1], d_hidden, d_hidden, with_bias=True)
    enc_wo, _ = _linear_init(keys[2], d_hidden, d_latent, with_bias=False)
    # Decoder RNN: i2h (bias=0), h2h (bias=True), h2o (bias=0)
    dec_wi, _ = _linear_init(keys[3], d_latent, d_hidden, with_bias=False)
    dec_wh, dec_bh = _linear_init(keys[4], d_hidden, d_hidden, with_bias=True)
    dec_wo, _ = _linear_init(keys[5], d_hidden, d_input, with_bias=False)
    return {
        "encoder": {"w_i2h": enc_wi, "w_h2h": enc_wh, "b_h2h": enc_bh, "w_h2o": enc_wo},
        "decoder": {"w_i2h": dec_wi, "w_h2h": dec_wh, "b_h2h": dec_bh, "w_h2o": dec_wo},
    }


def _rnn_reference(x, wi, wh, bh, wo):
    """Pure-JAX reference of the RNN loop (for correctness check only)."""
    def step(h, xt):
        z = jnp.maximum(xt @ wi + h @ wh + bh, 0.0)
        return z, (z, z @ wo)
    h0 = jnp.zeros((x.shape[1], wh.shape[0]), x.dtype)
    _, (hid, out) = jax.lax.scan(step, h0, x)
    return hid, out


if __name__ == "__main__":
    # Small shapes consistent with the module's forward.
    T = 8            # sequence_length
    B = 2            # batch
    d_input = 4
    d_hidden = 32
    d_latent = 8

    key = jax.random.PRNGKey(0)
    kx, kp = jax.random.split(key)
    x = jax.random.normal(kx, (T, B, d_input), jnp.float32)
    params = make_params(kp, d_input, d_hidden, d_latent)

    hidden, latent, reconstructed = rnn_autoencoder_forward(x, params, sequence_length=T)
    jax.block_until_ready((hidden, latent, reconstructed))

    # Numerical check against a pure-JAX reference of the same forward.
    enc, dec = params["encoder"], params["decoder"]
    ref_hid, ref_out = _rnn_reference(x, enc["w_i2h"], enc["w_h2h"], enc["b_h2h"], enc["w_h2o"])
    ref_latent = ref_out[-1]
    ref_lat_exp = jnp.broadcast_to(ref_latent[None], (T, B, d_latent))
    _, ref_rec = _rnn_reference(ref_lat_exp, dec["w_i2h"], dec["w_h2h"], dec["b_h2h"], dec["w_h2o"])

    assert hidden.shape == (T, B, d_hidden)
    assert latent.shape == (B, d_latent)
    assert reconstructed.shape == (T, B, d_input)
    np.testing.assert_allclose(np.asarray(hidden), np.asarray(ref_hid), rtol=1e-5, atol=1e-5)
    np.testing.assert_allclose(np.asarray(latent), np.asarray(ref_latent), rtol=1e-5, atol=1e-5)
    # Reconstruction path uses the host-fused Wo_e@Wi_d (f32 reassociation) -> slightly looser.
    np.testing.assert_allclose(np.asarray(reconstructed), np.asarray(ref_rec), rtol=2e-5, atol=2e-5)

    print("KERNEL_OK")
</pallas_src>

<mosaic_0001>
module attributes {stable_mosaic.version = 11 : i64} {
  func.func @_rnn_auto_fused_kernel(%arg0: i32, %arg1: memref<64x128xf32, #tpu.memory_space<vmem>>, %arg2: memref<128x128xf32, #tpu.memory_space<vmem>>, %arg3: memref<128x128xf32, #tpu.memory_space<vmem>>, %arg4: memref<1x128xf32, #tpu.memory_space<vmem>>, %arg5: memref<128x256xf32, #tpu.memory_space<vmem>>, %arg6: memref<1x128xf32, #tpu.memory_space<vmem>>, %arg7: memref<128x128xf32, #tpu.memory_space<any>>, %arg8: memref<128x128xf32, #tpu.memory_space<any>>, %arg9: memref<64x128xf32, #tpu.memory_space<vmem>>, %arg10: memref<8x128xf32, #tpu.memory_space<vmem>>, %arg11: memref<64x128xf32, #tpu.memory_space<vmem>>, %arg12: memref<128x128xf32, #tpu.memory_space<vmem>>, %arg13: memref<128x128xf32, #tpu.memory_space<vmem>>, %arg14: memref<2x!tpu.dma_semaphore, #tpu.memory_space<semaphore_mem>>, %arg15: memref<64x128xf32, #tpu.memory_space<vmem>>) attributes {dimension_semantics = [#tpu.dimension_semantics<arbitrary>], iteration_bounds = array<i64: 1>, scalar_prefetch = 0 : i64, scratch_operands = 4 : i64, tpu.core_type = #tpu.core_type<tc>, window_params = [{pipeline_mode = #tpu.pipeline_mode<synchronous>, transform_indices = @transform_0, window_bounds = array<i64: 64, 128>}, {pipeline_mode = #tpu.pipeline_mode<synchronous>, transform_indices = @transform_1, window_bounds = array<i64: 128, 128>}, {pipeline_mode = #tpu.pipeline_mode<synchronous>, transform_indices = @transform_2, window_bounds = array<i64: 128, 128>}, {pipeline_mode = #tpu.pipeline_mode<synchronous>, transform_indices = @transform_3, window_bounds = array<i64: 1, 128>}, {pipeline_mode = #tpu.pipeline_mode<synchronous>, transform_indices = @transform_4, window_bounds = array<i64: 128, 256>}, {pipeline_mode = #tpu.pipeline_mode<synchronous>, transform_indices = @transform_5, window_bounds = array<i64: 1, 128>}, {}, {}, {pipeline_mode = #tpu.pipeline_mode<synchronous>, transform_indices = @transform_8, window_bounds = array<i64: 64, 128>}, {pipeline_mode = #tpu.pipeline_mode<synchronous>, transform_indices = @transform_9, window_bounds = array<i64: 8, 128>}, {pipeline_mode = #tpu.pipeline_mode<synchronous>, transform_indices = @transform_10, window_bounds = array<i64: 64, 128>}]} {
    %c0_i32 = arith.constant 0 : i32
    %0 = tpu.memref_slice %arg14[%c0_i32] : memref<2x!tpu.dma_semaphore, #tpu.memory_space<semaphore_mem>> -> memref<1x!tpu.dma_semaphore, #tpu.memory_space<semaphore_mem>>
    %1 = tpu.memref_squeeze %0 : memref<1x!tpu.dma_semaphore, #tpu.memory_space<semaphore_mem>> -> memref<!tpu.dma_semaphore, #tpu.memory_space<semaphore_mem>>
    tpu.enqueue_dma source(%arg7 : memref<128x128xf32, #tpu.memory_space<any>>) target(%arg12 : memref<128x128xf32, #tpu.memory_space<vmem>>) target_semaphore(%1 : memref<!tpu.dma_semaphore, #tpu.memory_space<semaphore_mem>>)
    %c1_i32 = arith.constant 1 : i32
    %2 = tpu.memref_slice %arg14[%c1_i32] : memref<2x!tpu.dma_semaphore, #tpu.memory_space<semaphore_mem>> -> memref<1x!tpu.dma_semaphore, #tpu.memory_space<semaphore_mem>>
    %3 = tpu.memref_squeeze %2 : memref<1x!tpu.dma_semaphore, #tpu.memory_space<semaphore_mem>> -> memref<!tpu.dma_semaphore, #tpu.memory_space<semaphore_mem>>
    tpu.enqueue_dma source(%arg8 : memref<128x128xf32, #tpu.memory_space<any>>) target(%arg13 : memref<128x128xf32, #tpu.memory_space<vmem>>) target_semaphore(%3 : memref<!tpu.dma_semaphore, #tpu.memory_space<semaphore_mem>>)
    %c0 = arith.constant 0 : index
    %c0_0 = arith.constant 0 : index
    %4 = vector.load %arg3[%c0, %c0_0] : memref<128x128xf32, #tpu.memory_space<vmem>>, vector<128x128xf32>
    %c0_1 = arith.constant 0 : index
    %c0_2 = arith.constant 0 : index
    %5 = vector.load %arg1[%c0_1, %c0_2] : memref<64x128xf32, #tpu.memory_space<vmem>>, vector<64x128xf32>
    %c0_3 = arith.constant 0 : index
    %c0_4 = arith.constant 0 : index
    %6 = vector.load %arg2[%c0_3, %c0_4] : memref<128x128xf32, #tpu.memory_space<vmem>>, vector<128x128xf32>
    %cst = arith.constant dense<0.000000e+00> : vector<64x128xf32>
    %7 = tpu.matmul %5, %6, %cst {dimension_numbers = #tpu.dot_dimension_numbers<[1], [0], [0], [1], [0, 0, 1, 1], [], []>} : vector<64x128xf32>, vector<128x128xf32>, vector<64x128xf32> -> vector<64x128xf32>
    %c0_5 = arith.constant 0 : index
    %c0_6 = arith.constant 0 : index
    %8 = vector.load %arg4[%c0_5, %c0_6] : memref<1x128xf32, #tpu.memory_space<vmem>>, vector<1x128xf32>
    %9 = vector.broadcast %8 : vector<1x128xf32> to vector<64x128xf32>
    %10 = arith.addf %7, %9 : vector<64x128xf32>
    %cst_7 = arith.constant 0.000000e+00 : f32
    %11 = vector.broadcast %cst_7 : f32 to vector<8x128xf32>
    %cst_8 = arith.constant dense<0.000000e+00> : vector<8x128xf32>
    %12 = tpu.matmul %11, %4, %cst_8 {dimension_numbers = #tpu.dot_dimension_numbers<[1], [0], [0], [1], [0, 0, 1, 1], [], []>} : vector<8x128xf32>, vector<128x128xf32>, vector<8x128xf32> -> vector<8x128xf32>
    %13 = vector.extract_strided_slice %10 {offsets = [0, 0], sizes = [8, 128], strides = [1, 1]} : vector<64x128xf32> to vector<8x128xf32>
    %14 = arith.addf %12, %13 : vector<8x128xf32>
    %cst_9 = arith.constant 0.000000e+00 : f32
    %15 = vector.broadcast %cst_9 : f32 to vector<8x128xf32>
    %16 = arith.maximumf %14, %15 : vector<8x128xf32>
    %c0_10 = arith.constant 0 : index
    %c0_11 = arith.constant 0 : index
    %17 = vector.load %arg9[%c0_10, %c0_11] : memref<64x128xf32, #tpu.memory_space<vmem>>, vector<8x128xf32>
    tpu.vector_store %arg9[%c0_10, %c0_11], %16 {strides = array<i32>} : memref<64x128xf32, #tpu.memory_space<vmem>>, vector<8x128xf32>,
    %cst_12 = arith.constant dense<0.000000e+00> : vector<8x128xf32>
    %18 = tpu.matmul %16, %4, %cst_12 {dimension_numbers = #tpu.dot_dimension_numbers<[1], [0], [0], [1], [0, 0, 1, 1], [], []>} : vector<8x128xf32>, vector<128x128xf32>, vector<8x128xf32> -> vector<8x128xf32>
    %19 = vector.extract_strided_slice %10 {offsets = [8, 0], sizes = [8, 128], strides = [1, 1]} : vector<64x128xf32> to vector<8x128xf32>
    %20 = arith.addf %18, %19 : vector<8x128xf32>
    %cst_13 = arith.constant 0.000000e+00 : f32
    %21 = vector.broadcast %cst_13 : f32 to vector<8x128xf32>
    %22 = arith.maximumf %20, %21 : vector<8x128xf32>
    %c8 = arith.constant 8 : index
    %c0_14 = arith.constant 0 : index
    %23 = vector.load %arg9[%c8, %c0_14] : memref<64x128xf32, #tpu.memory_space<vmem>>, vector<8x128xf32>
    tpu.vector_store %arg9[%c8, %c0_14], %22 {strides = array<i32>} : memref<64x128xf32, #tpu.memory_space<vmem>>, vector<8x128xf32>,
    %cst_15 = arith.constant dense<0.000000e+00> : vector<8x128xf32>
    %24 = tpu.matmul %22, %4, %cst_15 {dimension_numbers = #tpu.dot_dimension_numbers<[1], [0], [0], [1], [0, 0, 1, 1], [], []>} : vector<8x128xf32>, vector<128x128xf32>, vector<8x128xf32> -> vector<8x128xf32>
    %25 = vector.extract_strided_slice %10 {offsets = [16, 0], sizes = [8, 128], strides = [1, 1]} : vector<64x128xf32> to vector<8x128xf32>
    %26 = arith.addf %24, %25 : vector<8x128xf32>
    %cst_16 = arith.constant 0.000000e+00 : f32
    %27 = vector.broadcast %cst_16 : f32 to vector<8x128xf32>
    %28 = arith.maximumf %26, %27 : vector<8x128xf32>
    %c16 = arith.constant 16 : index
    %c0_17 = arith.constant 0 : index
    %29 = vector.load %arg9[%c16, %c0_17] : memref<64x128xf32, #tpu.memory_space<vmem>>, vector<8x128xf32>
    tpu.vector_store %arg9[%c16, %c0_17], %28 {strides = array<i32>} : memref<64x128xf32, #tpu.memory_space<vmem>>, vector<8x128xf32>,
    %cst_18 = arith.constant dense<0.000000e+00> : vector<8x128xf32>
    %30 = tpu.matmul %28, %4, %cst_18 {dimension_numbers = #tpu.dot_dimension_numbers<[1], [0], [0], [1], [0, 0, 1, 1], [], []>} : vector<8x128xf32>, vector<128x128xf32>, vector<8x128xf32> -> vector<8x128xf32>
    %31 = vector.extract_strided_slice %10 {offsets = [24, 0], sizes = [8, 128], strides = [1, 1]} : vector<64x128xf32> to vector<8x128xf32>
    %32 = arith.addf %30, %31 : vector<8x128xf32>
    %cst_19 = arith.constant 0.000000e+00 : f32
    %33 = vector.broadcast %cst_19 : f32 to vector<8x128xf32>
    %34 = arith.maximumf %32, %33 : vector<8x128xf32>
    %c24 = arith.constant 24 : index
    %c0_20 = arith.constant 0 : index
    %35 = vector.load %arg9[%c24, %c0_20] : memref<64x128xf32, #tpu.memory_space<vmem>>, vector<8x128xf32>
    tpu.vector_store %arg9[%c24, %c0_20], %34 {strides = array<i32>} : memref<64x128xf32, #tpu.memory_space<vmem>>, vector<8x128xf32>,
    %cst_21 = arith.constant dense<0.000000e+00> : vector<8x128xf32>
    %36 = tpu.matmul %34, %4, %cst_21 {dimension_numbers = #tpu.dot_dimension_numbers<[1], [0], [0], [1], [0, 0, 1, 1], [], []>} : vector<8x128xf32>, vector<128x128xf32>, vector<8x128xf32> -> vector<8x128xf32>
    %37 = vector.extract_strided_slice %10 {offsets = [32, 0], sizes = [8, 128], strides = [1, 1]} : vector<64x128xf32> to vector<8x128xf32>
    %38 = arith.addf %36, %37 : vector<8x128xf32>
    %cst_22 = arith.constant 0.000000e+00 : f32
    %39 = vector.broadcast %cst_22 : f32 to vector<8x128xf32>
    %40 = arith.maximumf %38, %39 : vector<8x128xf32>
    %c32 = arith.constant 32 : index
    %c0_23 = arith.constant 0 : index
    %41 = vector.load %arg9[%c32, %c0_23] : memref<64x128xf32, #tpu.memory_space<vmem>>, vector<8x128xf32>
    tpu.vector_store %arg9[%c32, %c0_23], %40 {strides = array<i32>} : memref<64x128xf32, #tpu.memory_space<vmem>>, vector<8x128xf32>,
    %cst_24 = arith.constant dense<0.000000e+00> : vector<8x128xf32>
    %42 = tpu.matmul %40, %4, %cst_24 {dimension_numbers = #tpu.dot_dimension_numbers<[1], [0], [0], [1], [0, 0, 1, 1], [], []>} : vector<8x128xf32>, vector<128x128xf32>, vector<8x128xf32> -> vector<8x128xf32>
    %43 = vector.extract_strided_slice %10 {offsets = [40, 0], sizes = [8, 128], strides = [1, 1]} : vector<64x128xf32> to vector<8x128xf32>
    %44 = arith.addf %42, %43 : vector<8x128xf32>
    %cst_25 = arith.constant 0.000000e+00 : f32
    %45 = vector.broadcast %cst_25 : f32 to vector<8x128xf32>
    %46 = arith.maximumf %44, %45 : vector<8x128xf32>
    %c40 = arith.constant 40 : index
    %c0_26 = arith.constant 0 : index
    %47 = vector.load %arg9[%c40, %c0_26] : memref<64x128xf32, #tpu.memory_space<vmem>>, vector<8x128xf32>
    tpu.vector_store %arg9[%c40, %c0_26], %46 {strides = array<i32>} : memref<64x128xf32, #tpu.memory_space<vmem>>, vector<8x128xf32>,
    %cst_27 = arith.constant dense<0.000000e+00> : vector<8x128xf32>
    %48 = tpu.matmul %46, %4, %cst_27 {dimension_numbers = #tpu.dot_dimension_numbers<[1], [0], [0], [1], [0, 0, 1, 1], [], []>} : vector<8x128xf32>, vector<128x128xf32>, vector<8x128xf32> -> vector<8x128xf32>
    %49 = vector.extract_strided_slice %10 {offsets = [48, 0], sizes = [8, 128], strides = [1, 1]} : vector<64x128xf32> to vector<8x128xf32>
    %50 = arith.addf %48, %49 : vector<8x128xf32>
    %cst_28 = arith.constant 0.000000e+00 : f32
    %51 = vector.broadcast %cst_28 : f32 to vector<8x128xf32>
    %52 = arith.maximumf %50, %51 : vector<8x128xf32>
    %c48 = arith.constant 48 : index
    %c0_29 = arith.constant 0 : index
    %53 = vector.load %arg9[%c48, %c0_29] : memref<64x128xf32, #tpu.memory_space<vmem>>, vector<8x128xf32>
    tpu.vector_store %arg9[%c48, %c0_29], %52 {strides = array<i32>} : memref<64x128xf32, #tpu.memory_space<vmem>>, vector<8x128xf32>,
    %cst_30 = arith.constant dense<0.000000e+00> : vector<8x128xf32>
    %54 = tpu.matmul %52, %4, %cst_30 {dimension_numbers = #tpu.dot_dimension_numbers<[1], [0], [0], [1], [0, 0, 1, 1], [], []>} : vector<8x128xf32>, vector<128x128xf32>, vector<8x128xf32> -> vector<8x128xf32>
    %55 = vector.extract_strided_slice %10 {offsets = [56, 0], sizes = [8, 128], strides = [1, 1]} : vector<64x128xf32> to vector<8x128xf32>
    %56 = arith.addf %54, %55 : vector<8x128xf32>
    %cst_31 = arith.constant 0.000000e+00 : f32
    %57 = vector.broadcast %cst_31 : f32 to vector<8x128xf32>
    %58 = arith.maximumf %56, %57 : vector<8x128xf32>
    %c56 = arith.constant 56 : index
    %c0_32 = arith.constant 0 : index
    %59 = vector.load %arg9[%c56, %c0_32] : memref<64x128xf32, #tpu.memory_space<vmem>>, vector<8x128xf32>
    tpu.vector_store %arg9[%c56, %c0_32], %58 {strides = array<i32>} : memref<64x128xf32, #tpu.memory_space<vmem>>, vector<8x128xf32>,
    %c0_33 = arith.constant 0 : index
    %c0_34 = arith.constant 0 : index
    %60 = vector.load %arg5[%c0_33, %c0_34] : memref<128x256xf32, #tpu.memory_space<vmem>>, vector<128x256xf32>
    %cst_35 = arith.constant dense<0.000000e+00> : vector<8x256xf32>
    %61 = tpu.matmul %58, %60, %cst_35 {dimension_numbers = #tpu.dot_dimension_numbers<[1], [0], [0], [1], [0, 0, 1, 1], [], []>} : vector<8x128xf32>, vector<128x256xf32>, vector<8x256xf32> -> vector<8x256xf32>
    %62 = vector.extract_strided_slice %61 {offsets = [0, 0], sizes = [8, 128], strides = [1, 1]} : vector<8x256xf32> to vector<8x128xf32>
    %c0_36 = arith.constant 0 : index
    %c0_37 = arith.constant 0 : index
    %63 = vector.load %arg10[%c0_36, %c0_37] : memref<8x128xf32, #tpu.memory_space<vmem>>, vector<8x128xf32>
    tpu.vector_store %arg10[%c0_36, %c0_37], %62 {strides = array<i32>} : memref<8x128xf32, #tpu.memory_space<vmem>>, vector<8x128xf32>,
    %64 = vector.extract_strided_slice %61 {offsets = [0, 128], sizes = [8, 128], strides = [1, 1]} : vector<8x256xf32> to vector<8x128xf32>
    %c0_38 = arith.constant 0 : index
    %c0_39 = arith.constant 0 : index
    %65 = vector.load %arg6[%c0_38, %c0_39] : memref<1x128xf32, #tpu.memory_space<vmem>>, vector<1x128xf32>
    %66 = vector.broadcast %65 : vector<1x128xf32> to vector<8x128xf32>
    %67 = arith.addf %64, %66 : vector<8x128xf32>
    %c0_i32_40 = arith.constant 0 : i32
    %68 = tpu.memref_slice %arg14[%c0_i32_40] : memref<2x!tpu.dma_semaphore, #tpu.memory_space<semaphore_mem>> -> memref<1x!tpu.dma_semaphore, #tpu.memory_space<semaphore_mem>>
    %69 = tpu.memref_squeeze %68 : memref<1x!tpu.dma_semaphore, #tpu.memory_space<semaphore_mem>> -> memref<!tpu.dma_semaphore, #tpu.memory_space<semaphore_mem>>
    tpu.wait_dma2 semaphore(%69 : memref<!tpu.dma_semaphore, #tpu.memory_space<semaphore_mem>>) src(%arg7 : memref<128x128xf32, #tpu.memory_space<any>>) dst(%arg12 : memref<128x128xf32, #tpu.memory_space<vmem>>)
    %c0_41 = arith.constant 0 : index
    %c0_42 = arith.constant 0 : index
    %70 = vector.load %arg12[%c0_41, %c0_42] : memref<128x128xf32, #tpu.memory_space<vmem>>, vector<128x128xf32>
    %cst_43 = arith.constant 0.000000e+00 : f32
    %71 = vector.broadcast %cst_43 : f32 to vector<8x128xf32>
    %cst_44 = arith.constant dense<0.000000e+00> : vector<8x128xf32>
    %72 = tpu.matmul %71, %70, %cst_44 {dimension_numbers = #tpu.dot_dimension_numbers<[1], [0], [0], [1], [0, 0, 1, 1], [], []>} : vector<8x128xf32>, vector<128x128xf32>, vector<8x128xf32> -> vector<8x128xf32>
    %73 = arith.addf %72, %67 : vector<8x128xf32>
    %cst_45 = arith.constant 0.000000e+00 : f32
    %74 = vector.broadcast %cst_45 : f32 to vector<8x128xf32>
    %75 = arith.maximumf %73, %74 : vector<8x128xf32>
    %c0_46 = arith.constant 0 : index
    %c0_47 = arith.constant 0 : index
    %76 = vector.load %arg15[%c0_46, %c0_47] : memref<64x128xf32, #tpu.memory_space<vmem>>, vector<8x128xf32>
    tpu.vector_store %arg15[%c0_46, %c0_47], %75 {strides = array<i32>} : memref<64x128xf32, #tpu.memory_space<vmem>>, vector<8x128xf32>,
    %cst_48 = arith.constant dense<0.000000e+00> : vector<8x128xf32>
    %77 = tpu.matmul %75, %70, %cst_48 {dimension_numbers = #tpu.dot_dimension_numbers<[1], [0], [0], [1], [0, 0, 1, 1], [], []>} : vector<8x128xf32>, vector<128x128xf32>, vector<8x128xf32> -> vector<8x128xf32>
    %78 = arith.addf %77, %67 : vector<8x128xf32>
    %cst_49 = arith.constant 0.000000e+00 : f32
    %79 = vector.broadcast %cst_49 : f32 to vector<8x128xf32>
    %80 = arith.maximumf %78, %79 : vector<8x128xf32>
    %c8_50 = arith.constant 8 : index
    %c0_51 = arith.constant 0 : index
    %81 = vector.load %arg15[%c8_50, %c0_51] : memref<64x128xf32, #tpu.memory_space<vmem>>, vector<8x128xf32>
    tpu.vector_store %arg15[%c8_50, %c0_51], %80 {strides = array<i32>} : memref<64x128xf32, #tpu.memory_space<vmem>>, vector<8x128xf32>,
    %cst_52 = arith.constant dense<0.000000e+00> : vector<8x128xf32>
    %82 = tpu.matmul %80, %70, %cst_52 {dimension_numbers = #tpu.dot_dimension_numbers<[1], [0], [0], [1], [0, 0, 1, 1], [], []>} : vector<8x128xf32>, vector<128x128xf32>, vector<8x128xf32> -> vector<8x128xf32>
    %83 = arith.addf %82, %67 : vector<8x128xf32>
    %cst_53 = arith.constant 0.000000e+00 : f32
    %84 = vector.broadcast %cst_53 : f32 to vector<8x128xf32>
    %85 = arith.maximumf %83, %84 : vector<8x128xf32>
    %c16_54 = arith.constant 16 : index
    %c0_55 = arith.constant 0 : index
    %86 = vector.load %arg15[%c16_54, %c0_55] : memref<64x128xf32, #tpu.memory_space<vmem>>, vector<8x128xf32>
    tpu.vector_store %arg15[%c16_54, %c0_55], %85 {strides = array<i32>} : memref<64x128xf32, #tpu.memory_space<vmem>>, vector<8x128xf32>,
    %cst_56 = arith.constant dense<0.000000e+00> : vector<8x128xf32>
    %87 = tpu.matmul %85, %70, %cst_56 {dimension_numbers = #tpu.dot_dimension_numbers<[1], [0], [0], [1], [0, 0, 1, 1], [], []>} : vector<8x128xf32>, vector<128x128xf32>, vector<8x128xf32> -> vector<8x128xf32>
    %88 = arith.addf %87, %67 : vector<8x128xf32>
    %cst_57 = arith.constant 0.000000e+00 : f32
    %89 = vector.broadcast %cst_57 : f32 to vector<8x128xf32>
    %90 = arith.maximumf %88, %89 : vector<8x128xf32>
    %c24_58 = arith.constant 24 : index
    %c0_59 = arith.constant 0 : index
    %91 = vector.load %arg15[%c24_58, %c0_59] : memref<64x128xf32, #tpu.memory_space<vmem>>, vector<8x128xf32>
    tpu.vector_store %arg15[%c24_58, %c0_59], %90 {strides = array<i32>} : memref<64x128xf32, #tpu.memory_space<vmem>>, vector<8x128xf32>,
    %cst_60 = arith.constant dense<0.000000e+00> : vector<8x128xf32>
    %92 = tpu.matmul %90, %70, %cst_60 {dimension_numbers = #tpu.dot_dimension_numbers<[1], [0], [0], [1], [0, 0, 1, 1], [], []>} : vector<8x128xf32>, vector<128x128xf32>, vector<8x128xf32> -> vector<8x128xf32>
    %93 = arith.addf %92, %67 : vector<8x128xf32>
    %cst_61 = arith.constant 0.000000e+00 : f32
    %94 = vector.broadcast %cst_61 : f32 to vector<8x128xf32>
    %95 = arith.maximumf %93, %94 : vector<8x128xf32>
    %c32_62 = arith.constant 32 : index
    %c0_63 = arith.constant 0 : index
    %96 = vector.load %arg15[%c32_62, %c0_63] : memref<64x128xf32, #tpu.memory_space<vmem>>, vector<8x128xf32>
    tpu.vector_store %arg15[%c32_62, %c0_63], %95 {strides = array<i32>} : memref<64x128xf32, #tpu.memory_space<vmem>>, vector<8x128xf32>,
    %cst_64 = arith.constant dense<0.000000e+00> : vector<8x128xf32>
    %97 = tpu.matmul %95, %70, %cst_64 {dimension_numbers = #tpu.dot_dimension_numbers<[1], [0], [0], [1], [0, 0, 1, 1], [], []>} : vector<8x128xf32>, vector<128x128xf32>, vector<8x128xf32> -> vector<8x128xf32>
    %98 = arith.addf %97, %67 : vector<8x128xf32>
    %cst_65 = arith.constant 0.000000e+00 : f32
    %99 = vector.broadcast %cst_65 : f32 to vector<8x128xf32>
    %100 = arith.maximumf %98, %99 : vector<8x128xf32>
    %c40_66 = arith.constant 40 : index
    %c0_67 = arith.constant 0 : index
    %101 = vector.load %arg15[%c40_66, %c0_67] : memref<64x128xf32, #tpu.memory_space<vmem>>, vector<8x128xf32>
    tpu.vector_store %arg15[%c40_66, %c0_67], %100 {strides = array<i32>} : memref<64x128xf32, #tpu.memory_space<vmem>>, vector<8x128xf32>,
    %cst_68 = arith.constant dense<0.000000e+00> : vector<8x128xf32>
    %102 = tpu.matmul %100, %70, %cst_68 {dimension_numbers = #tpu.dot_dimension_numbers<[1], [0], [0], [1], [0, 0, 1, 1], [], []>} : vector<8x128xf32>, vector<128x128xf32>, vector<8x128xf32> -> vector<8x128xf32>
    %103 = arith.addf %102, %67 : vector<8x128xf32>
    %cst_69 = arith.constant 0.000000e+00 : f32
    %104 = vector.broadcast %cst_69 : f32 to vector<8x128xf32>
    %105 = arith.maximumf %103, %104 : vector<8x128xf32>
    %c48_70 = arith.constant 48 : index
    %c0_71 = arith.constant 0 : index
    %106 = vector.load %arg15[%c48_70, %c0_71] : memref<64x128xf32, #tpu.memory_space<vmem>>, vector<8x128xf32>
    tpu.vector_store %arg15[%c48_70, %c0_71], %105 {strides = array<i32>} : memref<64x128xf32, #tpu.memory_space<vmem>>, vector<8x128xf32>,
    %cst_72 = arith.constant dense<0.000000e+00> : vector<8x128xf32>
    %107 = tpu.matmul %105, %70, %cst_72 {dimension_numbers = #tpu.dot_dimension_numbers<[1], [0], [0], [1], [0, 0, 1, 1], [], []>} : vector<8x128xf32>, vector<128x128xf32>, vector<8x128xf32> -> vector<8x128xf32>
    %108 = arith.addf %107, %67 : vector<8x128xf32>
    %cst_73 = arith.constant 0.000000e+00 : f32
    %109 = vector.broadcast %cst_73 : f32 to vector<8x128xf32>
    %110 = arith.maximumf %108, %109 : vector<8x128xf32>
    %c56_74 = arith.constant 56 : index
    %c0_75 = arith.constant 0 : index
    %111 = vector.load %arg15[%c56_74, %c0_75] : memref<64x128xf32, #tpu.memory_space<vmem>>, vector<8x128xf32>
    tpu.vector_store %arg15[%c56_74, %c0_75], %110 {strides = array<i32>} : memref<64x128xf32, #tpu.memory_space<vmem>>, vector<8x128xf32>,
    %c1_i32_76 = arith.constant 1 : i32
    %112 = tpu.memref_slice %arg14[%c1_i32_76] : memref<2x!tpu.dma_semaphore, #tpu.memory_space<semaphore_mem>> -> memref<1x!tpu.dma_semaphore, #tpu.memory_space<semaphore_mem>>
    %113 = tpu.memref_squeeze %112 : memref<1x!tpu.dma_semaphore, #tpu.memory_space<semaphore_mem>> -> memref<!tpu.dma_semaphore, #tpu.memory_space<semaphore_mem>>
    tpu.wait_dma2 semaphore(%113 : memref<!tpu.dma_semaphore, #tpu.memory_space<semaphore_mem>>) src(%arg8 : memref<128x128xf32, #tpu.memory_space<any>>) dst(%arg13 : memref<128x128xf32, #tpu.memory_space<vmem>>)
    %c0_77 = arith.constant 0 : index
    %c0_78 = arith.constant 0 : index
    %114 = vector.load %arg15[%c0_77, %c0_78] : memref<64x128xf32, #tpu.memory_space<vmem>>, vector<64x128xf32>
    %c0_79 = arith.constant 0 : index
    %c0_80 = arith.constant 0 : index
    %115 = vector.load %arg13[%c0_79, %c0_80] : memref<128x128xf32, #tpu.memory_space<vmem>>, vector<128x128xf32>
    %cst_81 = arith.constant dense<0.000000e+00> : vector<64x128xf32>
    %116 = tpu.matmul %114, %115, %cst_81 {dimension_numbers = #tpu.dot_dimension_numbers<[1], [0], [0], [1], [0, 0, 1, 1], [], []>} : vector<64x128xf32>, vector<128x128xf32>, vector<64x128xf32> -> vector<64x128xf32>
    %c0_82 = arith.constant 0 : index
    %c0_83 = arith.constant 0 : index
    %117 = vector.load %arg11[%c0_82, %c0_83] : memref<64x128xf32, #tpu.memory_space<vmem>>, vector<64x128xf32>
    tpu.vector_store %arg11[%c0_82, %c0_83], %116 {strides = array<i32>} : memref<64x128xf32, #tpu.memory_space<vmem>>, vector<64x128xf32>,
    return
  }
  func.func @transform_0(%arg0: i32) -> (i32, i32) {
    %c0_i32 = arith.constant 0 : i32
    %c0_i32_0 = arith.constant 0 : i32
    %c0_i32_1 = arith.constant 0 : i32
    return %c0_i32, %c0_i32_0 : i32, i32
  }
  func.func @transform_1(%arg0: i32) -> (i32, i32) {
    %c0_i32 = arith.constant 0 : i32
    %c0_i32_0 = arith.constant 0 : i32
    %c0_i32_1 = arith.constant 0 : i32
    return %c0_i32, %c0_i32_0 : i32, i32
  }
  func.func @transform_2(%arg0: i32) -> (i32, i32) {
    %c0_i32 = arith.constant 0 : i32
    %c0_i32_0 = arith.constant 0 : i32
    %c0_i32_1 = arith.constant 0 : i32
    return %c0_i32, %c0_i32_0 : i32, i32
  }
  func.func @transform_3(%arg0: i32) -> (i32, i32) {
    %c0_i32 = arith.constant 0 : i32
    %c0_i32_0 = arith.constant 0 : i32
    %c0_i32_1 = arith.constant 0 : i32
    return %c0_i32, %c0_i32_0 : i32, i32
  }
  func.func @transform_4(%arg0: i32) -> (i32, i32) {
    %c0_i32 = arith.constant 0 : i32
    %c0_i32_0 = arith.constant 0 : i32
    %c0_i32_1 = arith.constant 0 : i32
    return %c0_i32, %c0_i32_0 : i32, i32
  }
  func.func @transform_5(%arg0: i32) -> (i32, i32) {
    %c0_i32 = arith.constant 0 : i32
    %c0_i32_0 = arith.constant 0 : i32
    %c0_i32_1 = arith.constant 0 : i32
    return %c0_i32, %c0_i32_0 : i32, i32
  }
  func.func @transform_8(%arg0: i32) -> (i32, i32) {
    %c0_i32 = arith.constant 0 : i32
    %c0_i32_0 = arith.constant 0 : i32
    %c0_i32_1 = arith.constant 0 : i32
    return %c0_i32, %c0_i32_0 : i32, i32
  }
  func.func @transform_9(%arg0: i32) -> (i32, i32) {
    %c0_i32 = arith.constant 0 : i32
    %c0_i32_0 = arith.constant 0 : i32
    %c0_i32_1 = arith.constant 0 : i32
    return %c0_i32, %c0_i32_0 : i32, i32
  }
  func.func @transform_10(%arg0: i32) -> (i32, i32) {
    %c0_i32 = arith.constant 0 : i32
    %c0_i32_0 = arith.constant 0 : i32
    %c0_i32_1 = arith.constant 0 : i32
    return %c0_i32, %c0_i32_0 : i32, i32
  }
}

</mosaic_0001>

<llo_original>
// kernel: tpu_custom_call.1
$region0: #{tpu_custom_call.1}
  #allocation0 [shape = 'u32[]', space=smem, size = 0x4, offset = 0x4, fixed_abs, tag = 'smem constant byte address 0x4 - core index']
  #allocation1 [shape = 'u32[72,128]{1,0:T(1,128)}', space=vmem, size = 0x9000, scoped, tag = 'internal scratch']
  #allocation2 [shape = 'f32[128,128]{1,0:T(8,128)}', space=vmem, size = 0x10000, scoped, tag = 'scratch operand']
  #allocation3 [shape = 'f32[128,128]{1,0:T(8,128)}', space=vmem, size = 0x10000, scoped, tag = 'scratch operand']
  #allocation4 [shape = 's32[2]{0}', space=sflag, size = 0x8, scoped, tag = 'scratch operand']
  #allocation5 [shape = 'f32[64,128]{1,0:T(8,128)}', space=vmem, size = 0x8000, scoped, tag = 'scratch operand']
  #allocation18 [shape = 's32[]', space=sflag, size = 0x4, offset = 0, fixed_abs, tag = 'sflag constant byte address 0x0 - dummy sync flag']
  #allocation19 [shape = 's32[]', space=sflag, size = 0x4, offset = 0, fixed_abs, tag = 'sflag constant byte address 0x0 - dummy sync flag']
  #allocation20 [shape = 'u32[]', space=smem, size = 0x4, offset = 0x44, fixed_abs, tag = 'smem constant byte address 0x44 - assertion arg 0']
  #allocation21 [shape = 'u32[]', space=smem, size = 0x4, offset = 0x48, fixed_abs, tag = 'smem constant byte address 0x48 - assertion arg 1']
  #allocation22 [shape = 's32[]', space=sflag, size = 0x4, offset = 0, fixed_abs, tag = 'sflag constant byte address 0x0 - dummy sync flag']
  #allocation23 [shape = 's32[]', space=sflag, size = 0x4, offset = 0, fixed_abs, tag = 'sflag constant byte address 0x0 - dummy sync flag']
  %s0 = inlined_call_operand.hbm [shape: f32[64,128], index: 0, kind: input, shape index: {}]
  %s1 = inlined_call_operand.hbm [shape: f32[128,128], index: 1, kind: input, shape index: {}]
  %s2 = inlined_call_operand.hbm [shape: f32[128,128], index: 2, kind: input, shape index: {}]
  %s3 = inlined_call_operand.vmem [shape: f32[1,128], index: 3, kind: input, shape index: {}]
  %s4 = inlined_call_operand.hbm [shape: f32[128,256], index: 4, kind: input, shape index: {}]
  %s5 = inlined_call_operand.vmem [shape: f32[1,128], index: 5, kind: input, shape index: {}]
  %s6 = inlined_call_operand.hbm [shape: f32[128,128], index: 6, kind: input, shape index: {}]
  %s7 = inlined_call_operand.hbm [shape: f32[128,128], index: 7, kind: input, shape index: {}]
  %s8 = inlined_call_operand.hbm [shape: f32[64,128], index: 8, kind: output, shape index: {0}]
  %s9 = inlined_call_operand.hbm [shape: f32[8,128], index: 9, kind: output, shape index: {1}]
  %s10 = inlined_call_operand.hbm [shape: f32[64,128], index: 10, kind: output, shape index: {2}]
  %11 = xla_tuple %s8, %s9, %s10
  %s12 = sld [smem:[#allocation0]]
  $region74: #{tpu_custom_call.1} parent=0
    _
  %s14 = ssub.s32 1, %s12
  %s15 = scalar_select 0, %s14, %s12
  $region1: #{tpu_custom_call.1} parent=0
    #allocation6 [shape = 'u8[32768]{0}', space=vmem, size = 0x8000, scoped, tag = 'input window, operand 0, single buffered']
    #allocation7 [shape = 's32[1]{0}', space=sflag, size = 0x4, scoped, tag = 'scoped memory for tpu_custom_call.1']
    #allocation8 [shape = 's32[1]{0}', space=sflag, size = 0x4, scoped, tag = 'scoped memory for tpu_custom_call.1']
    #allocation9 [shape = 'u8[65536]{0}', space=vmem, size = 0x10000, scoped, tag = 'input window, operand 1, single buffered']
    #allocation10 [shape = 's32[1]{0}', space=sflag, size = 0x4, scoped, tag = 'scoped memory for tpu_custom_call.1']
    #allocation11 [shape = 'u8[65536]{0}', space=vmem, size = 0x10000, scoped, tag = 'input window, operand 2, single buffered']
    #allocation12 [shape = 'u8[131072]{0}', space=vmem, size = 0x20000, scoped, tag = 'input window, operand 4, single buffered']
    #allocation13 [shape = 's32[1]{0}', space=sflag, size = 0x4, scoped, tag = 'scoped memory for tpu_custom_call.1']
    #allocation14 [shape = 'u8[32768]{0}', space=vmem, size = 0x8000, scoped, tag = 'output window, operand 0, single buffered']
    #allocation15 [shape = 'u8[4096]{0}', space=vmem, size = 0x1000, scoped, tag = 'output window, operand 1, single buffered']
    #allocation16 [shape = 's32[1]{0}', space=sflag, size = 0x4, scoped, tag = 'scoped memory for tpu_custom_call.1']
    #allocation17 [shape = 'u8[32768]{0}', space=vmem, size = 0x8000, scoped, tag = 'output window, operand 2, single buffered']
    %16 = vsyncpa [#allocation7], 0
    %17 = vsyncpa [#allocation10], 0
    %18 = vsyncpa [#allocation13], 0
    %19 = vsyncpa [#allocation8], 0
    %20 = vsyncpa [#allocation16], 0
    // Predicated region
    $region2: #{tpu_custom_call.1} parent=1 // pred_check
      _
    $region3: #{tpu_custom_call.1} parent=1 // pred_check_branch
      %22 = sbr.rel (0) target = $region5
    $region4: #{tpu_custom_call.1} parent=1 // pred_region
      %24 = vsyncadd [#allocation7], 0
      %s25 = sshll.u32 %s0, 4
      %s26 = int_to_ptr.hbm [resolvable:$true] %s25
      %s27 = sshll.u32 [#allocation6], 4
      %s28 = int_to_ptr.vmem [resolvable:$true] %s27
      %33 = dma.hbm_to_vmem [thread:$0]  %s26, 1024, %s28, [#allocation7], 128, 128, 8
    $region5: #{tpu_custom_call.1} parent=1 // pred_fallthru
      _
    // Predicated region
    $region6: #{tpu_custom_call.1} parent=1 // pred_check
      _
    $region7: #{tpu_custom_call.1} parent=1 // pred_check_branch
      %35 = sbr.rel (0) target = $region9
    $region8: #{tpu_custom_call.1} parent=1 // pred_region
      %37 = vsyncadd [#allocation10], 0
      %s38 = sshll.u32 %s1, 4
      %s39 = int_to_ptr.hbm [resolvable:$true] %s38
      %s40 = sshll.u32 [#allocation9], 4
      %s41 = int_to_ptr.vmem [resolvable:$true] %s40
      %46 = dma.hbm_to_vmem [thread:$0]  %s39, 2048, %s41, [#allocation10], 128, 128, 8
    $region9: #{tpu_custom_call.1} parent=1 // pred_fallthru
      _
    // Predicated region
    $region10: #{tpu_custom_call.1} parent=1 // pred_check
      _
    $region11: #{tpu_custom_call.1} parent=1 // pred_check_branch
      %48 = sbr.rel (0) target = $region13
    $region12: #{tpu_custom_call.1} parent=1 // pred_region
      %50 = vsyncadd [#allocation10], 0
      %s51 = sshll.u32 %s2, 4
      %s52 = int_to_ptr.hbm [resolvable:$true] %s51
      %s53 = sshll.u32 [#allocation11], 4
      %s54 = int_to_ptr.vmem [resolvable:$true] %s53
      %59 = dma.hbm_to_vmem [thread:$0]  %s52, 2048, %s54, [#allocation10], 128, 128, 8
    $region13: #{tpu_custom_call.1} parent=1 // pred_fallthru
      _
    // Predicated region
    $region14: #{tpu_custom_call.1} parent=1 // pred_check
      _
    $region15: #{tpu_custom_call.1} parent=1 // pred_check_branch
      %61 = sbr.rel (0) target = $region17
    $region16: #{tpu_custom_call.1} parent=1 // pred_region
      _
    $region17: #{tpu_custom_call.1} parent=1 // pred_fallthru
      _
    // Predicated region
    $region18: #{tpu_custom_call.1} parent=1 // pred_check
      _
    $region19: #{tpu_custom_call.1} parent=1 // pred_check_branch
      %63 = sbr.rel (0) target = $region21
    $region20: #{tpu_custom_call.1} parent=1 // pred_region
      %65 = vsyncadd [#allocation13], 0
      %s66 = sshll.u32 %s4, 4
      %s67 = int_to_ptr.hbm [resolvable:$true] %s66
      %s68 = sshll.u32 [#allocation12], 4
      %s69 = int_to_ptr.vmem [resolvable:$true] %s68
      %74 = dma.hbm_to_vmem [thread:$0]  %s67, 4096, %s69, [#allocation13], 256, 256, 16
    $region21: #{tpu_custom_call.1} parent=1 // pred_fallthru
      _
    // Predicated region
    $region22: #{tpu_custom_call.1} parent=1 // pred_check
      _
    $region23: #{tpu_custom_call.1} parent=1 // pred_check_branch
      %76 = sbr.rel (0) target = $region25
    $region24: #{tpu_custom_call.1} parent=1 // pred_region
      _
    $region25: #{tpu_custom_call.1} parent=1 // pred_fallthru
      _
    // Predicated region
    $region26: #{tpu_custom_call.1} parent=1 // pred_check
      _
    $region27: #{tpu_custom_call.1} parent=1 // pred_check_branch
      %78 = sbr.rel (0) target = $region29
    $region28: #{tpu_custom_call.1} parent=1 // pred_region
      %80 = dma.done [#allocation7], 1024
    $region29: #{tpu_custom_call.1} parent=1 // pred_fallthru
      _
    // Predicated region
    $region30: #{tpu_custom_call.1} parent=1 // pred_check
      _
    $region31: #{tpu_custom_call.1} parent=1 // pred_check_branch
      %82 = sbr.rel (0) target = $region33
    $region32: #{tpu_custom_call.1} parent=1 // pred_region
      %84 = dma.done [#allocation10], 2048
    $region33: #{tpu_custom_call.1} parent=1 // pred_fallthru
      _
    // Predicated region
    $region34: #{tpu_custom_call.1} parent=1 // pred_check
      _
    $region35: #{tpu_custom_call.1} parent=1 // pred_check_branch
      %86 = sbr.rel (0) target = $region37
    $region36: #{tpu_custom_call.1} parent=1 // pred_region
      %88 = dma.done [#allocation10], 2048
    $region37: #{tpu_custom_call.1} parent=1 // pred_fallthru
      _
    // Predicated region
    $region38: #{tpu_custom_call.1} parent=1 // pred_check
      _
    $region39: #{tpu_custom_call.1} parent=1 // pred_check_branch
      %90 = sbr.rel (0) target = $region41
    $region40: #{tpu_custom_call.1} parent=1 // pred_region
      %92 = dma.done [#allocation13], 4096
    $region41: #{tpu_custom_call.1} parent=1 // pred_fallthru
      _
    // Predicated region
    $region42: #{tpu_custom_call.1} parent=1 // pred_check
      _
    $region43: #{tpu_custom_call.1} parent=1 // pred_check_branch
      %94 = sbr.rel target = $region45
    $region44: #{tpu_custom_call.1} parent=1 // pred_region
      %95 = sst [smem:[#allocation20]] [#allocation19]
      %96 = sst [smem:[#allocation21]] [#allocation18]
    $region45: #{tpu_custom_call.1} parent=1 // pred_fallthru
      _
    %98 = shalt.err (0)
    %s100 = sshll.u32 %s6, 4
    %s101 = int_to_ptr.hbm [resolvable:$true] %s100
    %s102 = sshll.u32 [#allocation2], 4
    %s103 = int_to_ptr.vmem [resolvable:$true] %s102
    %105 = dma.hbm_to_vmem [thread:$0]  %s101, 2048, %s103, [#allocation4]
    %s106 = scalar_lea.sflag [#allocation4], 1
    // Predicated region
    $region46: #{tpu_custom_call.1} parent=1 // pred_check
      _
    $region47: #{tpu_custom_call.1} parent=1 // pred_check_branch
      %108 = sbr.rel target = $region49
    $region48: #{tpu_custom_call.1} parent=1 // pred_region
      %109 = sst [smem:[#allocation20]] [#allocation23]
      %110 = sst [smem:[#allocation21]] [#allocation22]
    $region49: #{tpu_custom_call.1} parent=1 // pred_fallthru
      _
    %112 = shalt.err (0)
    %s114 = sshll.u32 %s7, 4
    %s115 = int_to_ptr.hbm [resolvable:$true] %s114
    %s116 = sshll.u32 [#allocation3], 4
    %s117 = int_to_ptr.vmem [resolvable:$true] %s116
    %119 = dma.hbm_to_vmem [thread:$0]  %s115, 2048, %s117, %s106
    %v120 = vld [vmem:[#allocation11] sm:$0xff]
    %v121 = vld [vmem:[#allocation11 + $0x8] sm:$0xff]
    %v122 = vld [vmem:[#allocation11 + $0x10] sm:$0xff]
    %v123 = vld [vmem:[#allocation11 + $0x18] sm:$0xff]
    %v124 = vld [vmem:[#allocation11 + $0x20] sm:$0xff]
    %v125 = vld [vmem:[#allocation11 + $0x28] sm:$0xff]
    %v126 = vld [vmem:[#allocation11 + $0x30] sm:$0xff]
    %v127 = vld [vmem:[#allocation11 + $0x38] sm:$0xff]
    %v128 = vld [vmem:[#allocation11 + $0x40] sm:$0xff]
    %v129 = vld [vmem:[#allocation11 + $0x48] sm:$0xff]
    %v130 = vld [vmem:[#allocation11 + $0x50] sm:$0xff]
    %v131 = vld [vmem:[#allocation11 + $0x58] sm:$0xff]
    %v132 = vld [vmem:[#allocation11 + $0x60] sm:$0xff]
    %v133 = vld [vmem:[#allocation11 + $0x68] sm:$0xff]
    %v134 = vld [vmem:[#allocation11 + $0x70] sm:$0xff]
    %v135 = vld [vmem:[#allocation11 + $0x78] sm:$0xff]
    %v136 = vld [vmem:[#allocation6] sm:$0xff]
    %v137 = vld [vmem:[#allocation6 + $0x8] sm:$0xff]
    %v138 = vld [vmem:[#allocation6 + $0x10] sm:$0xff]
    %v139 = vld [vmem:[#allocation6 + $0x18] sm:$0xff]
    %v140 = vld [vmem:[#allocation6 + $0x20] sm:$0xff]
    %v141 = vld [vmem:[#allocation6 + $0x28] sm:$0xff]
    %v142 = vld [vmem:[#allocation6 + $0x30] sm:$0xff]
    %v143 = vld [vmem:[#allocation6 + $0x38] sm:$0xff]
    %v144 = vld [vmem:[#allocation9] sm:$0xff]
    %v145 = vld [vmem:[#allocation9 + $0x8] sm:$0xff]
    %v146 = vld [vmem:[#allocation9 + $0x10] sm:$0xff]
    %v147 = vld [vmem:[#allocation9 + $0x18] sm:$0xff]
    %v148 = vld [vmem:[#allocation9 + $0x20] sm:$0xff]
    %v149 = vld [vmem:[#allocation9 + $0x28] sm:$0xff]
    %v150 = vld [vmem:[#allocation9 + $0x30] sm:$0xff]
    %v151 = vld [vmem:[#allocation9 + $0x38] sm:$0xff]
    %v152 = vld [vmem:[#allocation9 + $0x40] sm:$0xff]
    %v153 = vld [vmem:[#allocation9 + $0x48] sm:$0xff]
    %v154 = vld [vmem:[#allocation9 + $0x50] sm:$0xff]
    %v155 = vld [vmem:[#allocation9 + $0x58] sm:$0xff]
    %v156 = vld [vmem:[#allocation9 + $0x60] sm:$0xff]
    %v157 = vld [vmem:[#allocation9 + $0x68] sm:$0xff]
    %v158 = vld [vmem:[#allocation9 + $0x70] sm:$0xff]
    %v159 = vld [vmem:[#allocation9 + $0x78] sm:$0xff]
    %v160 = vld [vmem:[%s3] sm:$0x1]
    %v162 = vperm.slane %v160, 0
    %164 = vmatpush.msra.mxu0 %v159
    %165 = vmatpush.msra.mxu0 %v158
    %166 = vmatpush.msra.mxu0 %v157
    %167 = vmatpush.msra.mxu0 %v156
    %168 = vmatpush.msra.mxu0 %v155
    %169 = vmatpush.msra.mxu0 %v154
    %170 = vmatpush.msra.mxu0 %v153
    %171 = vmatpush.msra.mxu0 %v152
    %172 = vmatpush.msra.mxu0 %v151
    %173 = vmatpush.msra.mxu0 %v150
    %174 = vmatpush.msra.mxu0 %v149
    %175 = vmatpush.msra.mxu0 %v148
    %176 = vmatpush.msra.mxu0 %v147
    %177 = vmatpush.msra.mxu0 %v146
    %178 = vmatpush.msra.mxu0 %v145
    %179 = vmatpush.msra.mxu0 %v144
    %180 = vmatmul.f32.gmra.mxu0 %v136
    %v181 = vpop.f32.mrf.mxu0
    %v182 = vadd.f32 %v162, %v181
    %183 = vmatmul.f32.gmra.mxu0 %v137
    %v184 = vpop.f32.mrf.mxu0
    %v185 = vadd.f32 %v162, %v184
    %186 = vmatmul.f32.gmra.mxu0 %v138
    %v187 = vpop.f32.mrf.mxu0
    %v188 = vadd.f32 %v162, %v187
    %189 = vmatmul.f32.gmra.mxu0 %v139
    %v190 = vpop.f32.mrf.mxu0
    %v191 = vadd.f32 %v162, %v190
    %192 = vmatmul.f32.gmra.mxu0 %v140
    %v193 = vpop.f32.mrf.mxu0
    %v194 = vadd.f32 %v162, %v193
    %195 = vmatmul.f32.gmra.mxu0 %v141
    %v196 = vpop.f32.mrf.mxu0
    %v197 = vadd.f32 %v162, %v196
    %198 = vmatmul.f32.gmra.mxu0 %v142
    %v199 = vpop.f32.mrf.mxu0
    %v200 = vadd.f32 %v162, %v199
    %201 = vmatmul.f32.gmra.mxu0 %v143
    %v202 = vpop.f32.mrf.mxu0
    %v203 = vadd.f32 %v162, %v202
    %204 = vdwg.mxu0
    %205 = vmatpush.msra.mxu0 %v135
    %206 = vmatpush.msra.mxu0 %v134
    %207 = vmatpush.msra.mxu0 %v133
    %208 = vmatpush.msra.mxu0 %v132
    %209 = vmatpush.msra.mxu0 %v131
    %210 = vmatpush.msra.mxu0 %v130
    %211 = vmatpush.msra.mxu0 %v129
    %212 = vmatpush.msra.mxu0 %v128
    %213 = vmatpush.msra.mxu0 %v127
    %214 = vmatpush.msra.mxu0 %v126
    %215 = vmatpush.msra.mxu0 %v125
    %216 = vmatpush.msra.mxu0 %v124
    %217 = vmatpush.msra.mxu0 %v123
    %218 = vmatpush.msra.mxu0 %v122
    %219 = vmatpush.msra.mxu0 %v121
    %220 = vmatpush.msra.mxu0 %v120
    %221 = vmatmul.f32.gmra.mxu0 0.0
    %v222 = vpop.f32.mrf.mxu0
    %v223 = vadd.f32 %v182, %v222
    %224 = vdwg.mxu0
    %v225 = vmax.f32 %v223, 0.0
    %226 = vst [vmem:[#allocation14] sm:$0xff] %v225
    %227 = vmatpush.msra.mxu0 %v135
    %228 = vmatpush.msra.mxu0 %v134
    %229 = vmatpush.msra.mxu0 %v133
    %230 = vmatpush.msra.mxu0 %v132
    %231 = vmatpush.msra.mxu0 %v131
    %232 = vmatpush.msra.mxu0 %v130
    %233 = vmatpush.msra.mxu0 %v129
    %234 = vmatpush.msra.mxu0 %v128
    %235 = vmatpush.msra.mxu0 %v127
    %236 = vmatpush.msra.mxu0 %v126
    %237 = vmatpush.msra.mxu0 %v125
    %238 = vmatpush.msra.mxu0 %v124
    %239 = vmatpush.msra.mxu0 %v123
    %240 = vmatpush.msra.mxu0 %v122
    %241 = vmatpush.msra.mxu0 %v121
    %242 = vmatpush.msra.mxu0 %v120
    %243 = vmatmul.f32.gmra.mxu0 %v225
    %v244 = vpop.f32.mrf.mxu0
    %v245 = vadd.f32 %v185, %v244
    %246 = vdwg.mxu0
    %v247 = vmax.f32 %v245, 0.0
    %248 = vst [vmem:[#allocation14 + $0x8] sm:$0xff] %v247
    %249 = vmatpush.msra.mxu0 %v135
    %250 = vmatpush.msra.mxu0 %v134
    %251 = vmatpush.msra.mxu0 %v133
    %252 = vmatpush.msra.mxu0 %v132
    %253 = vmatpush.msra.mxu0 %v131
    %254 = vmatpush.msra.mxu0 %v130
    %255 = vmatpush.msra.mxu0 %v129
    %256 = vmatpush.msra.mxu0 %v128
    %257 = vmatpush.msra.mxu0 %v127
    %258 = vmatpush.msra.mxu0 %v126
    %259 = vmatpush.msra.mxu0 %v125
    %260 = vmatpush.msra.mxu0 %v124
    %261 = vmatpush.msra.mxu0 %v123
    %262 = vmatpush.msra.mxu0 %v122
    %263 = vmatpush.msra.mxu0 %v121
    %264 = vmatpush.msra.mxu0 %v120
    %265 = vmatmul.f32.gmra.mxu0 %v247
    %v266 = vpop.f32.mrf.mxu0
    %v267 = vadd.f32 %v188, %v266
    %268 = vdwg.mxu0
    %v269 = vmax.f32 %v267, 0.0
    %270 = vst [vmem:[#allocation14 + $0x10] sm:$0xff] %v269
    %271 = vmatpush.msra.mxu0 %v135
    %272 = vmatpush.msra.mxu0 %v134
    %273 = vmatpush.msra.mxu0 %v133
    %274 = vmatpush.msra.mxu0 %v132
    %275 = vmatpush.msra.mxu0 %v131
    %276 = vmatpush.msra.mxu0 %v130
    %277 = vmatpush.msra.mxu0 %v129
    %278 = vmatpush.msra.mxu0 %v128
    %279 = vmatpush.msra.mxu0 %v127
    %280 = vmatpush.msra.mxu0 %v126
    %281 = vmatpush.msra.mxu0 %v125
    %282 = vmatpush.msra.mxu0 %v124
    %283 = vmatpush.msra.mxu0 %v123
    %284 = vmatpush.msra.mxu0 %v122
    %285 = vmatpush.msra.mxu0 %v121
    %286 = vmatpush.msra.mxu0 %v120
    %287 = vmatmul.f32.gmra.mxu0 %v269
    %v288 = vpop.f32.mrf.mxu0
    %v289 = vadd.f32 %v191, %v288
    %290 = vdwg.mxu0
    %v291 = vmax.f32 %v289, 0.0
    %292 = vst [vmem:[#allocation14 + $0x18] sm:$0xff] %v291
    %293 = vmatpush.msra.mxu0 %v135
    %294 = vmatpush.msra.mxu0 %v134
    %295 = vmatpush.msra.mxu0 %v133
    %296 = vmatpush.msra.mxu0 %v132
    %297 = vmatpush.msra.mxu0 %v131
    %298 = vmatpush.msra.mxu0 %v130
    %299 = vmatpush.msra.mxu0 %v129
    %300 = vmatpush.msra.mxu0 %v128
    %301 = vmatpush.msra.mxu0 %v127
    %302 = vmatpush.msra.mxu0 %v126
    %303 = vmatpush.msra.mxu0 %v125
    %304 = vmatpush.msra.mxu0 %v124
    %305 = vmatpush.msra.mxu0 %v123
    %306 = vmatpush.msra.mxu0 %v122
    %307 = vmatpush.msra.mxu0 %v121
    %308 = vmatpush.msra.mxu0 %v120
    %309 = vmatmul.f32.gmra.mxu0 %v291
    %v310 = vpop.f32.mrf.mxu0
    %v311 = vadd.f32 %v194, %v310
    %312 = vdwg.mxu0
    %v313 = vmax.f32 %v311, 0.0
    %314 = vst [vmem:[#allocation14 + $0x20] sm:$0xff] %v313
    %315 = vmatpush.msra.mxu0 %v135
    %316 = vmatpush.msra.mxu0 %v134
    %317 = vmatpush.msra.mxu0 %v133
    %318 = vmatpush.msra.mxu0 %v132
    %319 = vmatpush.msra.mxu0 %v131
    %320 = vmatpush.msra.mxu0 %v130
    %321 = vmatpush.msra.mxu0 %v129
    %322 = vmatpush.msra.mxu0 %v128
    %323 = vmatpush.msra.mxu0 %v127
    %324 = vmatpush.msra.mxu0 %v126
    %325 = vmatpush.msra.mxu0 %v125
    %326 = vmatpush.msra.mxu0 %v124
    %327 = vmatpush.msra.mxu0 %v123
    %328 = vmatpush.msra.mxu0 %v122
    %329 = vmatpush.msra.mxu0 %v121
    %330 = vmatpush.msra.mxu0 %v120
    %331 = vmatmul.f32.gmra.mxu0 %v313
    %v332 = vpop.f32.mrf.mxu0
    %v333 = vadd.f32 %v197, %v332
    %334 = vdwg.mxu0
    %v335 = vmax.f32 %v333, 0.0
    %336 = vst [vmem:[#allocation14 + $0x28] sm:$0xff] %v335
    %337 = vmatpush.msra.mxu0 %v135
    %338 = vmatpush.msra.mxu0 %v134
    %339 = vmatpush.msra.mxu0 %v133
    %340 = vmatpush.msra.mxu0 %v132
    %341 = vmatpush.msra.mxu0 %v131
    %342 = vmatpush.msra.mxu0 %v130
    %343 = vmatpush.msra.mxu0 %v129
    %344 = vmatpush.msra.mxu0 %v128
    %345 = vmatpush.msra.mxu0 %v127
    %346 = vmatpush.msra.mxu0 %v126
    %347 = vmatpush.msra.mxu0 %v125
    %348 = vmatpush.msra.mxu0 %v124
    %349 = vmatpush.msra.mxu0 %v123
    %350 = vmatpush.msra.mxu0 %v122
    %351 = vmatpush.msra.mxu0 %v121
    %352 = vmatpush.msra.mxu0 %v120
    %353 = vmatmul.f32.gmra.mxu0 %v335
    %v354 = vpop.f32.mrf.mxu0
    %v355 = vadd.f32 %v200, %v354
    %356 = vdwg.mxu0
    %v357 = vmax.f32 %v355, 0.0
    %358 = vst [vmem:[#allocation14 + $0x30] sm:$0xff] %v357
    %359 = vmatpush.msra.mxu0 %v135
    %360 = vmatpush.msra.mxu0 %v134
    %361 = vmatpush.msra.mxu0 %v133
    %362 = vmatpush.msra.mxu0 %v132
    %363 = vmatpush.msra.mxu0 %v131
    %364 = vmatpush.msra.mxu0 %v130
    %365 = vmatpush.msra.mxu0 %v129
    %366 = vmatpush.msra.mxu0 %v128
    %367 = vmatpush.msra.mxu0 %v127
    %368 = vmatpush.msra.mxu0 %v126
    %369 = vmatpush.msra.mxu0 %v125
    %370 = vmatpush.msra.mxu0 %v124
    %371 = vmatpush.msra.mxu0 %v123
    %372 = vmatpush.msra.mxu0 %v122
    %373 = vmatpush.msra.mxu0 %v121
    %374 = vmatpush.msra.mxu0 %v120
    %375 = vmatmul.f32.gmra.mxu0 %v357
    %v376 = vpop.f32.mrf.mxu0
    %v377 = vadd.f32 %v203, %v376
    %378 = vdwg.mxu0
    %v379 = vmax.f32 %v377, 0.0
    %380 = vst [vmem:[#allocation14 + $0x38] sm:$0xff] %v379
    %v381 = vld [vmem:[#allocation12] sm:$0xff]
    %v382 = vld [vmem:[#allocation12 + $0x8] sm:$0xff]
    %v383 = vld [vmem:[#allocation12 + $0x10] sm:$0xff]
    %v384 = vld [vmem:[#allocation12 + $0x18] sm:$0xff]
    %v385 = vld [vmem:[#allocation12 + $0x20] sm:$0xff]
    %v386 = vld [vmem:[#allocation12 + $0x28] sm:$0xff]
    %v387 = vld [vmem:[#allocation12 + $0x30] sm:$0xff]
    %v388 = vld [vmem:[#allocation12 + $0x38] sm:$0xff]
    %v389 = vld [vmem:[#allocation12 + $0x40] sm:$0xff]
    %v390 = vld [vmem:[#allocation12 + $0x48] sm:$0xff]
    %v391 = vld [vmem:[#allocation12 + $0x50] sm:$0xff]
    %v392 = vld [vmem:[#allocation12 + $0x58] sm:$0xff]
    %v393 = vld [vmem:[#allocation12 + $0x60] sm:$0xff]
    %v394 = vld [vmem:[#allocation12 + $0x68] sm:$0xff]
    %v395 = vld [vmem:[#allocation12 + $0x70] sm:$0xff]
    %v396 = vld [vmem:[#allocation12 + $0x78] sm:$0xff]
    %v397 = vld [vmem:[#allocation12 + $0x80] sm:$0xff]
    %v398 = vld [vmem:[#allocation12 + $0x88] sm:$0xff]
    %v399 = vld [vmem:[#allocation12 + $0x90] sm:$0xff]
    %v400 = vld [vmem:[#allocation12 + $0x98] sm:$0xff]
    %v401 = vld [vmem:[#allocation12 + $0xa0] sm:$0xff]
    %v402 = vld [vmem:[#allocation12 + $0xa8] sm:$0xff]
    %v403 = vld [vmem:[#allocation12 + $0xb0] sm:$0xff]
    %v404 = vld [vmem:[#allocation12 + $0xb8] sm:$0xff]
    %v405 = vld [vmem:[#allocation12 + $0xc0] sm:$0xff]
    %v406 = vld [vmem:[#allocation12 + $0xc8] sm:$0xff]
    %v407 = vld [vmem:[#allocation12 + $0xd0] sm:$0xff]
    %v408 = vld [vmem:[#allocation12 + $0xd8] sm:$0xff]
    %v409 = vld [vmem:[#allocation12 + $0xe0] sm:$0xff]
    %v410 = vld [vmem:[#allocation12 + $0xe8] sm:$0xff]
    %v411 = vld [vmem:[#allocation12 + $0xf0] sm:$0xff]
    %v412 = vld [vmem:[#allocation12 + $0xf8] sm:$0xff]
    %413 = vmatpush.msra.mxu0 %v411
    %414 = vmatpush.msra.mxu0 %v409
    %415 = vmatpush.msra.mxu0 %v407
    %416 = vmatpush.msra.mxu0 %v405
    %417 = vmatpush.msra.mxu0 %v403
    %418 = vmatpush.msra.mxu0 %v401
    %419 = vmatpush.msra.mxu0 %v399
    %420 = vmatpush.msra.mxu0 %v397
    %421 = vmatpush.msra.mxu0 %v395
    %422 = vmatpush.msra.mxu0 %v393
    %423 = vmatpush.msra.mxu0 %v391
    %424 = vmatpush.msra.mxu0 %v389
    %425 = vmatpush.msra.mxu0 %v387
    %426 = vmatpush.msra.mxu0 %v385
    %427 = vmatpush.msra.mxu0 %v383
    %428 = vmatpush.msra.mxu0 %v381
    %429 = vmatmul.f32.gmra.mxu0 %v379
    %v430 = vpop.f32.mrf.mxu0
    %v431 = vadd.f32 0.0, %v430
    %432 = vdwg.mxu0
    %433 = vmatpush.msra.mxu0 %v412
    %434 = vmatpush.msra.mxu0 %v410
    %435 = vmatpush.msra.mxu0 %v408
    %436 = vmatpush.msra.mxu0 %v406
    %437 = vmatpush.msra.mxu0 %v404
    %438 = vmatpush.msra.mxu0 %v402
    %439 = vmatpush.msra.mxu0 %v400
    %440 = vmatpush.msra.mxu0 %v398
    %441 = vmatpush.msra.mxu0 %v396
    %442 = vmatpush.msra.mxu0 %v394
    %443 = vmatpush.msra.mxu0 %v392
    %444 = vmatpush.msra.mxu0 %v390
    %445 = vmatpush.msra.mxu0 %v388
    %446 = vmatpush.msra.mxu0 %v386
    %447 = vmatpush.msra.mxu0 %v384
    %448 = vmatpush.msra.mxu0 %v382
    %449 = vmatmul.f32.gmra.mxu0 %v379
    %v450 = vpop.f32.mrf.mxu0
    %v451 = vadd.f32 0.0, %v450
    %452 = vdwg.mxu0
    %453 = vst [vmem:[#allocation15] sm:$0xff] %v431
    %v454 = vld [vmem:[%s5] sm:$0x1]
    %v456 = vperm.slane %v454, 0
    %v458 = vadd.f32 %v451, %v456
    %s459 = smul.u32 128, 1
    %s460 = sshll.u32 %s459, 4
    %461 = dma.done [#allocation4], %s460
    %v462 = vld [vmem:[#allocation2] sm:$0xff]
    %v463 = vld [vmem:[#allocation2 + $0x8] sm:$0xff]
    %v464 = vld [vmem:[#allocation2 + $0x10] sm:$0xff]
    %v465 = vld [vmem:[#allocation2 + $0x18] sm:$0xff]
    %v466 = vld [vmem:[#allocation2 + $0x20] sm:$0xff]
    %v467 = vld [vmem:[#allocation2 + $0x28] sm:$0xff]
    %v468 = vld [vmem:[#allocation2 + $0x30] sm:$0xff]
    %v469 = vld [vmem:[#allocation2 + $0x38] sm:$0xff]
    %v470 = vld [vmem:[#allocation2 + $0x40] sm:$0xff]
    %v471 = vld [vmem:[#allocation2 + $0x48] sm:$0xff]
    %v472 = vld [vmem:[#allocation2 + $0x50] sm:$0xff]
    %v473 = vld [vmem:[#allocation2 + $0x58] sm:$0xff]
    %v474 = vld [vmem:[#allocation2 + $0x60] sm:$0xff]
    %v475 = vld [vmem:[#allocation2 + $0x68] sm:$0xff]
    %v476 = vld [vmem:[#allocation2 + $0x70] sm:$0xff]
    %v477 = vld [vmem:[#allocation2 + $0x78] sm:$0xff]
    %478 = vmatpush.msra.mxu0 %v477
    %479 = vmatpush.msra.mxu0 %v476
    %480 = vmatpush.msra.mxu0 %v475
    %481 = vmatpush.msra.mxu0 %v474
    %482 = vmatpush.msra.mxu0 %v473
    %483 = vmatpush.msra.mxu0 %v472
    %484 = vmatpush.msra.mxu0 %v471
    %485 = vmatpush.msra.mxu0 %v470
    %486 = vmatpush.msra.mxu0 %v469
    %487 = vmatpush.msra.mxu0 %v468
    %488 = vmatpush.msra.mxu0 %v467
    %489 = vmatpush.msra.mxu0 %v466
    %490 = vmatpush.msra.mxu0 %v465
    %491 = vmatpush.msra.mxu0 %v464
    %492 = vmatpush.msra.mxu0 %v463
    %493 = vmatpush.msra.mxu0 %v462
    %494 = vmatmul.f32.gmra.mxu0 0.0
    %v495 = vpop.f32.mrf.mxu0
    %v496 = vadd.f32 %v458, %v495
    %497 = vdwg.mxu0
    %v498 = vmax.f32 %v496, 0.0
    %499 = vst [vmem:[#allocation5] sm:$0xff] %v498
    %500 = vmatpush.msra.mxu0 %v477
    %501 = vmatpush.msra.mxu0 %v476
    %502 = vmatpush.msra.mxu0 %v475
    %503 = vmatpush.msra.mxu0 %v474
    %504 = vmatpush.msra.mxu0 %v473
    %505 = vmatpush.msra.mxu0 %v472
    %506 = vmatpush.msra.mxu0 %v471
    %507 = vmatpush.msra.mxu0 %v470
    %508 = vmatpush.msra.mxu0 %v469
    %509 = vmatpush.msra.mxu0 %v468
    %510 = vmatpush.msra.mxu0 %v467
    %511 = vmatpush.msra.mxu0 %v466
    %512 = vmatpush.msra.mxu0 %v465
    %513 = vmatpush.msra.mxu0 %v464
    %514 = vmatpush.msra.mxu0 %v463
    %515 = vmatpush.msra.mxu0 %v462
    %516 = vmatmul.f32.gmra.mxu0 %v498
    %v517 = vpop.f32.mrf.mxu0
    %v518 = vadd.f32 %v458, %v517
    %519 = vdwg.mxu0
    %v520 = vmax.f32 %v518, 0.0
    %521 = vst [vmem:[#allocation5 + $0x8] sm:$0xff] %v520
    %522 = vmatpush.msra.mxu0 %v477
    %523 = vmatpush.msra.mxu0 %v476
    %524 = vmatpush.msra.mxu0 %v475
    %525 = vmatpush.msra.mxu0 %v474
    %526 = vmatpush.msra.mxu0 %v473
    %527 = vmatpush.msra.mxu0 %v472
    %528 = vmatpush.msra.mxu0 %v471
    %529 = vmatpush.msra.mxu0 %v470
    %530 = vmatpush.msra.mxu0 %v469
    %531 = vmatpush.msra.mxu0 %v468
    %532 = vmatpush.msra.mxu0 %v467
    %533 = vmatpush.msra.mxu0 %v466
    %534 = vmatpush.msra.mxu0 %v465
    %535 = vmatpush.msra.mxu0 %v464
    %536 = vmatpush.msra.mxu0 %v463
    %537 = vmatpush.msra.mxu0 %v462
    %538 = vmatmul.f32.gmra.mxu0 %v520
    %v539 = vpop.f32.mrf.mxu0
    %v540 = vadd.f32 %v458, %v539
    %541 = vdwg.mxu0
    %v542 = vmax.f32 %v540, 0.0
    %543 = vst [vmem:[#allocation5 + $0x10] sm:$0xff] %v542
    %544 = vmatpush.msra.mxu0 %v477
    %545 = vmatpush.msra.mxu0 %v476
    %546 = vmatpush.msra.mxu0 %v475
    %547 = vmatpush.msra.mxu0 %v474
    %548 = vmatpush.msra.mxu0 %v473
    %549 = vmatpush.msra.mxu0 %v472
    %550 = vmatpush.msra.mxu0 %v471
    %551 = vmatpush.msra.mxu0 %v470
    %552 = vmatpush.msra.mxu0 %v469
    %553 = vmatpush.msra.mxu0 %v468
    %554 = vmatpush.msra.mxu0 %v467
    %555 = vmatpush.msra.mxu0 %v466
    %556 = vmatpush.msra.mxu0 %v465
    %557 = vmatpush.msra.mxu0 %v464
    %558 = vmatpush.msra.mxu0 %v463
    %559 = vmatpush.msra.mxu0 %v462
    %560 = vmatmul.f32.gmra.mxu0 %v542
    %v561 = vpop.f32.mrf.mxu0
    %v562 = vadd.f32 %v458, %v561
    %563 = vdwg.mxu0
    %v564 = vmax.f32 %v562, 0.0
    %565 = vst [vmem:[#allocation5 + $0x18] sm:$0xff] %v564
    %566 = vmatpush.msra.mxu0 %v477
    %567 = vmatpush.msra.mxu0 %v476
    %568 = vmatpush.msra.mxu0 %v475
    %569 = vmatpush.msra.mxu0 %v474
    %570 = vmatpush.msra.mxu0 %v473
    %571 = vmatpush.msra.mxu0 %v472
    %572 = vmatpush.msra.mxu0 %v471
    %573 = vmatpush.msra.mxu0 %v470
    %574 = vmatpush.msra.mxu0 %v469
    %575 = vmatpush.msra.mxu0 %v468
    %576 = vmatpush.msra.mxu0 %v467
    %577 = vmatpush.msra.mxu0 %v466
    %578 = vmatpush.msra.mxu0 %v465
    %579 = vmatpush.msra.mxu0 %v464
    %580 = vmatpush.msra.mxu0 %v463
    %581 = vmatpush.msra.mxu0 %v462
    %582 = vmatmul.f32.gmra.mxu0 %v564
    %v583 = vpop.f32.mrf.mxu0
    %v584 = vadd.f32 %v458, %v583
    %585 = vdwg.mxu0
    %v586 = vmax.f32 %v584, 0.0
    %587 = vst [vmem:[#allocation5 + $0x20] sm:$0xff] %v586
    %588 = vmatpush.msra.mxu0 %v477
    %589 = vmatpush.msra.mxu0 %v476
    %590 = vmatpush.msra.mxu0 %v475
    %591 = vmatpush.msra.mxu0 %v474
    %592 = vmatpush.msra.mxu0 %v473
    %593 = vmatpush.msra.mxu0 %v472
    %594 = vmatpush.msra.mxu0 %v471
    %595 = vmatpush.msra.mxu0 %v470
    %596 = vmatpush.msra.mxu0 %v469
    %597 = vmatpush.msra.mxu0 %v468
    %598 = vmatpush.msra.mxu0 %v467
    %599 = vmatpush.msra.mxu0 %v466
    %600 = vmatpush.msra.mxu0 %v465
    %601 = vmatpush.msra.mxu0 %v464
    %602 = vmatpush.msra.mxu0 %v463
    %603 = vmatpush.msra.mxu0 %v462
    %604 = vmatmul.f32.gmra.mxu0 %v586
    %v605 = vpop.f32.mrf.mxu0
    %v606 = vadd.f32 %v458, %v605
    %607 = vdwg.mxu0
    %v608 = vmax.f32 %v606, 0.0
    %609 = vst [vmem:[#allocation5 + $0x28] sm:$0xff] %v608
    %610 = vmatpush.msra.mxu0 %v477
    %611 = vmatpush.msra.mxu0 %v476
    %612 = vmatpush.msra.mxu0 %v475
    %613 = vmatpush.msra.mxu0 %v474
    %614 = vmatpush.msra.mxu0 %v473
    %615 = vmatpush.msra.mxu0 %v472
    %616 = vmatpush.msra.mxu0 %v471
    %617 = vmatpush.msra.mxu0 %v470
    %618 = vmatpush.msra.mxu0 %v469
    %619 = vmatpush.msra.mxu0 %v468
    %620 = vmatpush.msra.mxu0 %v467
    %621 = vmatpush.msra.mxu0 %v466
    %622 = vmatpush.msra.mxu0 %v465
    %623 = vmatpush.msra.mxu0 %v464
    %624 = vmatpush.msra.mxu0 %v463
    %625 = vmatpush.msra.mxu0 %v462
    %626 = vmatmul.f32.gmra.mxu0 %v608
    %v627 = vpop.f32.mrf.mxu0
    %v628 = vadd.f32 %v458, %v627
    %629 = vdwg.mxu0
    %v630 = vmax.f32 %v628, 0.0
    %631 = vst [vmem:[#allocation5 + $0x30] sm:$0xff] %v630
    %632 = vmatpush.msra.mxu0 %v477
    %633 = vmatpush.msra.mxu0 %v476
    %634 = vmatpush.msra.mxu0 %v475
    %635 = vmatpush.msra.mxu0 %v474
    %636 = vmatpush.msra.mxu0 %v473
    %637 = vmatpush.msra.mxu0 %v472
    %638 = vmatpush.msra.mxu0 %v471
    %639 = vmatpush.msra.mxu0 %v470
    %640 = vmatpush.msra.mxu0 %v469
    %641 = vmatpush.msra.mxu0 %v468
    %642 = vmatpush.msra.mxu0 %v467
    %643 = vmatpush.msra.mxu0 %v466
    %644 = vmatpush.msra.mxu0 %v465
    %645 = vmatpush.msra.mxu0 %v464
    %646 = vmatpush.msra.mxu0 %v463
    %647 = vmatpush.msra.mxu0 %v462
    %648 = vmatmul.f32.gmra.mxu0 %v630
    %v649 = vpop.f32.mrf.mxu0
    %v650 = vadd.f32 %v458, %v649
    %651 = vdwg.mxu0
    %v652 = vmax.f32 %v650, 0.0
    %653 = vst [vmem:[#allocation5 + $0x38] sm:$0xff] %v652
    %s654 = sshll.u32 %s459, 4
    %655 = dma.done %s106, %s654
    %v656 = vld [vmem:[#allocation5] sm:$0xff]
    %v657 = vld [vmem:[#allocation5 + $0x8] sm:$0xff]
    %v658 = vld [vmem:[#allocation5 + $0x10] sm:$0xff]
    %v659 = vld [vmem:[#allocation5 + $0x18] sm:$0xff]
    %v660 = vld [vmem:[#allocation5 + $0x20] sm:$0xff]
    %v661 = vld [vmem:[#allocation5 + $0x28] sm:$0xff]
    %v662 = vld [vmem:[#allocation5 + $0x30] sm:$0xff]
    %v663 = vld [vmem:[#allocation5 + $0x38] sm:$0xff]
    %v664 = vld [vmem:[#allocation3] sm:$0xff]
    %v665 = vld [vmem:[#allocation3 + $0x8] sm:$0xff]
    %v666 = vld [vmem:[#allocation3 + $0x10] sm:$0xff]
    %v667 = vld [vmem:[#allocation3 + $0x18] sm:$0xff]
    %v668 = vld [vmem:[#allocation3 + $0x20] sm:$0xff]
    %v669 = vld [vmem:[#allocation3 + $0x28] sm:$0xff]
    %v670 = vld [vmem:[#allocation3 + $0x30] sm:$0xff]
    %v671 = vld [vmem:[#allocation3 + $0x38] sm:$0xff]
    %v672 = vld [vmem:[#allocation3 + $0x40] sm:$0xff]
    %v673 = vld [vmem:[#allocation3 + $0x48] sm:$0xff]
    %v674 = vld [vmem:[#allocation3 + $0x50] sm:$0xff]
    %v675 = vld [vmem:[#allocation3 + $0x58] sm:$0xff]
    %v676 = vld [vmem:[#allocation3 + $0x60] sm:$0xff]
    %v677 = vld [vmem:[#allocation3 + $0x68] sm:$0xff]
    %v678 = vld [vmem:[#allocation3 + $0x70] sm:$0xff]
    %v679 = vld [vmem:[#allocation3 + $0x78] sm:$0xff]
    %680 = vmatpush.msra.mxu0 %v679
    %681 = vmatpush.msra.mxu0 %v678
    %682 = vmatpush.msra.mxu0 %v677
    %683 = vmatpush.msra.mxu0 %v676
    %684 = vmatpush.msra.mxu0 %v675
    %685 = vmatpush.msra.mxu0 %v674
    %686 = vmatpush.msra.mxu0 %v673
    %687 = vmatpush.msra.mxu0 %v672
    %688 = vmatpush.msra.mxu0 %v671
    %689 = vmatpush.msra.mxu0 %v670
    %690 = vmatpush.msra.mxu0 %v669
    %691 = vmatpush.msra.mxu0 %v668
    %692 = vmatpush.msra.mxu0 %v667
    %693 = vmatpush.msra.mxu0 %v666
    %694 = vmatpush.msra.mxu0 %v665
    %695 = vmatpush.msra.mxu0 %v664
    %696 = vmatmul.f32.gmra.mxu0 %v656
    %v697 = vpop.f32.mrf.mxu0
    %v698 = vadd.f32 0.0, %v697
    %699 = vmatmul.f32.gmra.mxu0 %v657
    %v700 = vpop.f32.mrf.mxu0
    %v701 = vadd.f32 0.0, %v700
    %702 = vmatmul.f32.gmra.mxu0 %v658
    %v703 = vpop.f32.mrf.mxu0
    %v704 = vadd.f32 0.0, %v703
    %705 = vmatmul.f32.gmra.mxu0 %v659
    %v706 = vpop.f32.mrf.mxu0
    %v707 = vadd.f32 0.0, %v706
    %708 = vmatmul.f32.gmra.mxu0 %v660
    %v709 = vpop.f32.mrf.mxu0
    %v710 = vadd.f32 0.0, %v709
    %711 = vmatmul.f32.gmra.mxu0 %v661
    %v712 = vpop.f32.mrf.mxu0
    %v713 = vadd.f32 0.0, %v712
    %714 = vmatmul.f32.gmra.mxu0 %v662
    %v715 = vpop.f32.mrf.mxu0
    %v716 = vadd.f32 0.0, %v715
    %717 = vmatmul.f32.gmra.mxu0 %v663
    %v718 = vpop.f32.mrf.mxu0
    %v719 = vadd.f32 0.0, %v718
    %720 = vdwg.mxu0
    %721 = vst [vmem:[#allocation17] sm:$0xff] %v698
    %722 = vst [vmem:[#allocation17 + $0x8] sm:$0xff] %v701
    %723 = vst [vmem:[#allocation17 + $0x10] sm:$0xff] %v704
    %724 = vst [vmem:[#allocation17 + $0x18] sm:$0xff] %v707
    %725 = vst [vmem:[#allocation17 + $0x20] sm:$0xff] %v710
    %726 = vst [vmem:[#allocation17 + $0x28] sm:$0xff] %v713
    %727 = vst [vmem:[#allocation17 + $0x30] sm:$0xff] %v716
    %728 = vst [vmem:[#allocation17 + $0x38] sm:$0xff] %v719
    // Predicated region
    $region50: #{tpu_custom_call.1} parent=1 // pred_check
      _
    $region51: #{tpu_custom_call.1} parent=1 // pred_check_branch
      %730 = sbr.rel (0) target = $region53
    $region52: #{tpu_custom_call.1} parent=1 // pred_region
      %732 = vsyncadd [#allocation8], 0
      %s733 = sshll.u32 [#allocation14], 4
      %s734 = int_to_ptr.vmem [resolvable:$true] %s733
      %s735 = sshll.u32 %s8, 4
      %s736 = int_to_ptr.hbm [resolvable:$true] %s735
      %741 = dma.vmem_to_hbm [thread:$0]  %s734, 1024, %s736, [#allocation8], 128, 128, 8
    $region53: #{tpu_custom_call.1} parent=1 // pred_fallthru
      _
    // Predicated region
    $region54: #{tpu_custom_call.1} parent=1 // pred_check
      _
    $region55: #{tpu_custom_call.1} parent=1 // pred_check_branch
      %743 = sbr.rel (0) target = $region57
    $region56: #{tpu_custom_call.1} parent=1 // pred_region
      %745 = vsyncadd [#allocation16], 0
      %s747 = sshll.u32 [#allocation15], 4
      %s748 = int_to_ptr.vmem [resolvable:$true] %s747
      %s749 = sshll.u32 %s9, 4
      %s750 = int_to_ptr.hbm [resolvable:$true] %s749
      %752 = dma.vmem_to_hbm [thread:$0]  %s748, 128, %s750, [#allocation16]
    $region57: #{tpu_custom_call.1} parent=1 // pred_fallthru
      _
    // Predicated region
    $region58: #{tpu_custom_call.1} parent=1 // pred_check
      _
    $region59: #{tpu_custom_call.1} parent=1 // pred_check_branch
      %754 = sbr.rel (0) target = $region61
    $region60: #{tpu_custom_call.1} parent=1 // pred_region
      %756 = vsyncadd [#allocation16], 0
      %s757 = sshll.u32 [#allocation17], 4
      %s758 = int_to_ptr.vmem [resolvable:$true] %s757
      %s759 = sshll.u32 %s10, 4
      %s760 = int_to_ptr.hbm [resolvable:$true] %s759
      %765 = dma.vmem_to_hbm [thread:$0]  %s758, 1024, %s760, [#allocation16], 128, 128, 8
    $region61: #{tpu_custom_call.1} parent=1 // pred_fallthru
      _
    // Predicated region
    $region62: #{tpu_custom_call.1} parent=1 // pred_check
      _
    $region63: #{tpu_custom_call.1} parent=1 // pred_check_branch
      %767 = sbr.rel (0) target = $region65
    $region64: #{tpu_custom_call.1} parent=1 // pred_region
      %769 = dma.done [#allocation8], 1024
    $region65: #{tpu_custom_call.1} parent=1 // pred_fallthru
      _
    // Predicated region
    $region66: #{tpu_custom_call.1} parent=1 // pred_check
      _
    $region67: #{tpu_custom_call.1} parent=1 // pred_check_branch
      %771 = sbr.rel (0) target = $region69
    $region68: #{tpu_custom_call.1} parent=1 // pred_region
      %773 = dma.done [#allocation16], 128
    $region69: #{tpu_custom_call.1} parent=1 // pred_fallthru
      _
    // Predicated region
    $region70: #{tpu_custom_call.1} parent=1 // pred_check
      _
    $region71: #{tpu_custom_call.1} parent=1 // pred_check_branch
      %775 = sbr.rel (0) target = $region73
    $region72: #{tpu_custom_call.1} parent=1 // pred_region
      %777 = dma.done [#allocation16], 1024
    $region73: #{tpu_custom_call.1} parent=1 // pred_fallthru
      _
    %778 = vsyncpa [#allocation7], 1
    %779 = vsyncpa [#allocation10], 1
    %780 = vsyncpa [#allocation13], 1
    %781 = vsyncpa [#allocation8], 1
    %782 = vsyncpa [#allocation16], 1
  %783 = vsyncmov [#allocation4]
  %s784 = vpop.sfrf %783
  %p785 = scmp.eq.s32.totalorder %s784, 0
  %p786 = pneg %p785
  %788 = shalt.err (%p786)
  %s789 = scalar_lea.sflag [#allocation4], 1
  %790 = vsyncmov %s789
  %s791 = vpop.sfrf %790
  %p792 = scmp.eq.s32.totalorder %s791, 0
  %p793 = pneg %p792
  %795 = shalt.err (%p793)

</llo_original>
